<compile_context>
chip_gen: v5e
topology: v5e:2x2
jax: 0.10.0
libtpu: 0.0.40
codegen_flags: <defaults>
</compile_context>

<pallas_src>
import jax
import jax.numpy as jnp
from jax.experimental import pallas as pl
from jax.experimental.pallas import tpu as pltpu


def _round_up(a, b):
    return (a + b - 1) // b * b


def _patch_proj_kernel(p_ref, w_ref, b_ref, o_ref):
    # p_ref: (tm, K) flattened patches; w_ref: (K, E); b_ref: (1, E) f32;
    # o_ref: (tm, E).  Accumulate in f32 on the MXU, add bias, cast.
    acc = jnp.dot(p_ref[...], w_ref[...], preferred_element_type=jnp.float32)
    o_ref[...] = (acc + b_ref[...]).astype(o_ref.dtype)


def patch_embed_2d(x, weight, bias, patch_size):
    """Equivalent of PatchEmbed2D.forward (norm_layer=None).

    x:      (B, C, H, W)    NCHW, like PyTorch
    weight: (E, C, Ph, Pw)  PyTorch Conv2d weight layout
    bias:   (E,)
    returns (B, H//Ph, W//Pw, E)
    """
    if isinstance(patch_size, int):
        Ph = Pw = patch_size
    else:
        Ph, Pw = patch_size

    B, C, H, W = x.shape
    E = weight.shape[0]
    assert H % Ph == 0 and W % Pw == 0
    Hp, Wp = H // Ph, W // Pw

    K = C * Ph * Pw
    M = B * Hp * Wp

    # im2col with a layout XLA can move cheaply:
    #   1) NCHW -> NHWC (one standard transpose),
    #   2) split H->(Hp,Ph), W->(Wp,Pw) and swap Ph<->Wp; the minor contiguous
    #      chunk of this transpose is Pw*C elements (not Pw), so even if it
    #      materializes the DMA efficiency is reasonable.
    # Each patch row is flattened in (ph, pw, c) order.
    x_nhwc = jnp.transpose(x, (0, 2, 3, 1))                  # (B, H, W, C)
    patches = x_nhwc.reshape(B, Hp, Ph, Wp, Pw * C)
    patches = patches.transpose(0, 1, 3, 2, 4)               # (B, Hp, Wp, Ph, Pw*C)
    patches = patches.reshape(M, K)

    # Weight flattened in matching (Ph, Pw, C) order; cast to activation dtype
    # (VMEM-resident, so this is free HBM-wise; keeps the MXU inputs uniform).
    w_mat = jnp.transpose(weight, (2, 3, 1, 0)).reshape(K, E).astype(x.dtype)
    b_row = bias.astype(jnp.float32).reshape(1, E)           # added in f32

    # ---- M-tile selection -------------------------------------------------
    itemsize = jnp.dtype(x.dtype).itemsize
    if x.dtype == jnp.bfloat16:
        align, tm_target = 512, 8192
    else:
        align, tm_target = 256, 4096

    # Keep >= ~8 grid steps (v7x megacore sharding + deep DMA pipelining),
    # but never drop below 4*align rows per tile (per-step overhead floor).
    tm = min(tm_target, max(4 * align, _round_up(pl.cdiv(M, 8), align)))

    # VMEM clamp: double-buffered streamed (in + out) tiles + resident W/b
    # must stay well inside v5e's 16 MiB scoped-VMEM default.
    vmem_budget = 12 * 1024 * 1024
    resident = (K * E) * itemsize + E * 4
    row_bytes = 2 * (K + E) * itemsize                        # double-buffered
    tm_vmem = max(align, ((vmem_budget - resident) // row_bytes) // align * align)
    tm = min(tm, tm_vmem)

    # Never bigger than the (sublane-rounded) problem itself.
    tm = min(tm, _round_up(M, 8))

    grid = (pl.cdiv(M, tm),)

    cost = pl.CostEstimate(
        flops=2 * M * K * E,
        bytes_accessed=itemsize * (M * K + K * E + M * E) + 4 * E,
        transcendentals=0,
    )

    out = pl.pallas_call(
        _patch_proj_kernel,
        out_shape=jax.ShapeDtypeStruct((M, E), x.dtype),
        grid=grid,
        in_specs=[
            pl.BlockSpec((tm, K), lambda i: (i, 0)),          # patch rows, streamed
            pl.BlockSpec((K, E), lambda i: (0, 0)),           # weight, VMEM-resident
            pl.BlockSpec((1, E), lambda i: (0, 0)),           # bias row, resident
        ],
        out_specs=pl.BlockSpec((tm, E), lambda i: (i, 0)),    # unpadded, masked vst
        compiler_params=pltpu.CompilerParams(
            dimension_semantics=("parallel",),                # M shards across TCs (v7x)
            allow_input_fusion=[True, False, False],          # fold im2col if legal
        ),
        cost_estimate=cost,
    )(patches, w_mat, b_row)

    return out.reshape(B, Hp, Wp, E)
    # TODO(synk): norm_layer is None in the default module config; a
    # LayerNorm(embed_dim) would be fused into the kernel epilogue here.


if __name__ == "__main__":
    # Small shapes consistent with the module: batch=2, in_chans=4, 16x16 image,
    # patch_size=4, embed_dim=32.
    B, C, H, W = 2, 4, 16, 16
    P, E = 4, 32

    key = jax.random.PRNGKey(0)
    kx, kw, kb = jax.random.split(key, 3)
    x = jax.random.normal(kx, (B, C, H, W), dtype=jnp.float32)
    # Deterministic synthetic Conv2d(in_chans, embed_dim, P, stride=P) params.
    weight = jax.random.normal(kw, (E, C, P, P), dtype=jnp.float32) * 0.02
    bias = jax.random.normal(kb, (E,), dtype=jnp.float32) * 0.02

    out = patch_embed_2d(x, weight, bias, P)
    out = jax.block_until_ready(out)
    assert out.shape == (B, H // P, W // P, E)

    # Reference: lax conv with PyTorch Conv2d NCHW semantics, then permute.
    ref = jax.lax.conv_general_dilated(
        x, weight, window_strides=(P, P), padding="VALID",
        dimension_numbers=("NCHW", "OIHW", "NCHW"),
    ) + bias.reshape(1, E, 1, 1)
    ref = jnp.transpose(ref, (0, 2, 3, 1))

    assert jnp.allclose(out, ref, atol=1e-4, rtol=1e-4), \
        float(jnp.max(jnp.abs(out - ref)))

    print("KERNEL_OK")
</pallas_src>

<mosaic_0001>
module attributes {stable_mosaic.version = 11 : i64} {
  func.func @_patch_proj_kernel(%arg0: i32, %arg1: memref<32x64xf32, #tpu.memory_space<vmem>>, %arg2: memref<64x32xf32, #tpu.memory_space<vmem>>, %arg3: memref<1x32xf32, #tpu.memory_space<vmem>>, %arg4: memref<32x32xf32, #tpu.memory_space<vmem>>) attributes {dimension_semantics = [#tpu.dimension_semantics<parallel>], iteration_bounds = array<i64: 1>, scalar_prefetch = 0 : i64, scratch_operands = 0 : i64, tpu.core_type = #tpu.core_type<tc>, window_params = [{transform_indices = @transform_0, window_bounds = array<i64: 32, 64>}, {pipeline_mode = #tpu.pipeline_mode<synchronous>, transform_indices = @transform_1, window_bounds = array<i64: 64, 32>}, {pipeline_mode = #tpu.pipeline_mode<synchronous>, transform_indices = @transform_2, window_bounds = array<i64: 1, 32>}, {transform_indices = @transform_3, window_bounds = array<i64: 32, 32>}]} {
    %c0 = arith.constant 0 : index
    %c0_0 = arith.constant 0 : index
    %0 = vector.load %arg1[%c0, %c0_0] : memref<32x64xf32, #tpu.memory_space<vmem>>, vector<32x64xf32>
    %c0_1 = arith.constant 0 : index
    %c0_2 = arith.constant 0 : index
    %1 = vector.load %arg2[%c0_1, %c0_2] : memref<64x32xf32, #tpu.memory_space<vmem>>, vector<64x32xf32>
    %cst = arith.constant dense<0.000000e+00> : vector<32x32xf32>
    %2 = tpu.matmul %0, %1, %cst {dimension_numbers = #tpu.dot_dimension_numbers<[1], [0], [0], [1], [0, 0, 1, 1], [], []>} : vector<32x64xf32>, vector<64x32xf32>, vector<32x32xf32> -> vector<32x32xf32>
    %c0_3 = arith.constant 0 : index
    %c0_4 = arith.constant 0 : index
    %3 = vector.load %arg3[%c0_3, %c0_4] : memref<1x32xf32, #tpu.memory_space<vmem>>, vector<1x32xf32>
    %4 = vector.broadcast %3 : vector<1x32xf32> to vector<32x32xf32>
    %5 = arith.addf %2, %4 : vector<32x32xf32>
    %c0_5 = arith.constant 0 : index
    %c0_6 = arith.constant 0 : index
    %6 = vector.load %arg4[%c0_5, %c0_6] : memref<32x32xf32, #tpu.memory_space<vmem>>, vector<32x32xf32>
    tpu.vector_store %arg4[%c0_5, %c0_6], %5 {strides = array<i32>} : memref<32x32xf32, #tpu.memory_space<vmem>>, vector<32x32xf32>,
    return
  }
  func.func @transform_0(%arg0: i32) -> (i32, i32) {
    %c0_i32 = arith.constant 0 : i32
    %c0_i32_0 = arith.constant 0 : i32
    return %arg0, %c0_i32 : i32, i32
  }
  func.func @transform_1(%arg0: i32) -> (i32, i32) {
    %c0_i32 = arith.constant 0 : i32
    %c0_i32_0 = arith.constant 0 : i32
    %c0_i32_1 = arith.constant 0 : i32
    return %c0_i32, %c0_i32_0 : i32, i32
  }
  func.func @transform_2(%arg0: i32) -> (i32, i32) {
    %c0_i32 = arith.constant 0 : i32
    %c0_i32_0 = arith.constant 0 : i32
    %c0_i32_1 = arith.constant 0 : i32
    return %c0_i32, %c0_i32_0 : i32, i32
  }
  func.func @transform_3(%arg0: i32) -> (i32, i32) {
    %c0_i32 = arith.constant 0 : i32
    %c0_i32_0 = arith.constant 0 : i32
    return %arg0, %c0_i32 : i32, i32
  }
}

</mosaic_0001>

<llo_original>
// kernel: tpu_custom_call.1
$region0: #{tpu_custom_call.1}
  #allocation0 [shape = 'u32[]', space=smem, size = 0x4, offset = 0x4, fixed_abs, tag = 'smem constant byte address 0x4 - core index']
  #allocation1 [shape = 'u32[72,128]{1,0:T(1,128)}', space=vmem, size = 0x9000, scoped, tag = 'internal scratch']
  %s0 = inlined_call_operand.vmem [shape: f32[32,64], index: 0, kind: input, shape index: {}]
  %s1 = inlined_call_operand.vmem [shape: f32[64,32], index: 1, kind: input, shape index: {}]
  %s2 = inlined_call_operand.vmem [shape: f32[1,32], index: 2, kind: input, shape index: {}]
  %s3 = inlined_call_operand.hbm [shape: f32[32,32], index: 3, kind: output, shape index: {}]
  %s4 = sld [smem:[#allocation0]]
  $region22: #{tpu_custom_call.1} parent=0
    _
  %s6 = ssub.s32 1, %s4
  %s7 = scalar_select 0, %s6, %s4
  $region1: #{tpu_custom_call.1} parent=0
    #allocation2 [shape = 'u8[16384]{0}', space=vmem, size = 0x4000, scoped, tag = 'output window, operand 0, single buffered']
    #allocation3 [shape = 's32[1]{0}', space=sflag, size = 0x4, scoped, tag = 'scoped memory for tpu_custom_call.1']
    %8 = vsyncpa [#allocation3], 0
    // Predicated region
    $region2: #{tpu_custom_call.1} parent=1 // pred_check
      _
    $region3: #{tpu_custom_call.1} parent=1 // pred_check_branch
      %10 = sbr.rel (0) target = $region5
    $region4: #{tpu_custom_call.1} parent=1 // pred_region
      _
    $region5: #{tpu_custom_call.1} parent=1 // pred_fallthru
      _
    // Predicated region
    $region6: #{tpu_custom_call.1} parent=1 // pred_check
      _
    $region7: #{tpu_custom_call.1} parent=1 // pred_check_branch
      %12 = sbr.rel (0) target = $region9
    $region8: #{tpu_custom_call.1} parent=1 // pred_region
      _
    $region9: #{tpu_custom_call.1} parent=1 // pred_fallthru
      _
    // Predicated region
    $region10: #{tpu_custom_call.1} parent=1 // pred_check
      _
    $region11: #{tpu_custom_call.1} parent=1 // pred_check_branch
      %14 = sbr.rel (0) target = $region13
    $region12: #{tpu_custom_call.1} parent=1 // pred_region
      _
    $region13: #{tpu_custom_call.1} parent=1 // pred_fallthru
      _
    %v15 = vld [vmem:[%s0] sm:$0xff]
    %v16 = vld [vmem:[%s0 + $0x8] sm:$0xff]
    %v17 = vld [vmem:[%s0 + $0x10] sm:$0xff]
    %v18 = vld [vmem:[%s0 + $0x18] sm:$0xff]
    %v19 = vld [vmem:[%s1] sm:$0xff]
    %v20 = vld [vmem:[%s1 + $0x8] sm:$0xff]
    %v21 = vld [vmem:[%s1 + $0x10] sm:$0xff]
    %v22 = vld [vmem:[%s1 + $0x18] sm:$0xff]
    %v23 = vld [vmem:[%s1 + $0x20] sm:$0xff]
    %v24 = vld [vmem:[%s1 + $0x28] sm:$0xff]
    %v25 = vld [vmem:[%s1 + $0x30] sm:$0xff]
    %v26 = vld [vmem:[%s1 + $0x38] sm:$0xff]
    %v27 = vld [vmem:[%s2] sm:$0x1]
    %v29 = vperm.slane %v27, 0
    %vm31 = vcmask 523264
    %v33 = vsel %vm31, %v15, 0
    %v36 = vsel %vm31, %v16, 0
    %v39 = vsel %vm31, %v17, 0
    %v42 = vsel %vm31, %v18, 0
    %44 = vmatpush.msra.mxu0 0.0
    %45 = vmatpush.msra.mxu0 0.0
    %46 = vmatpush.msra.mxu0 0.0
    %47 = vmatpush.msra.mxu0 0.0
    %48 = vmatpush.msra.mxu0 0.0
    %49 = vmatpush.msra.mxu0 0.0
    %50 = vmatpush.msra.mxu0 0.0
    %51 = vmatpush.msra.mxu0 0.0
    %52 = vmatpush.msra.mxu0 %v26
    %53 = vmatpush.msra.mxu0 %v25
    %54 = vmatpush.msra.mxu0 %v24
    %55 = vmatpush.msra.mxu0 %v23
    %56 = vmatpush.msra.mxu0 %v22
    %57 = vmatpush.msra.mxu0 %v21
    %58 = vmatpush.msra.mxu0 %v20
    %59 = vmatpush.msra.mxu0 %v19
    %60 = vmatmul.f32.gmra.mxu0 %v33
    %v61 = vpop.f32.mrf.mxu0
    %v62 = vadd.f32 %v29, %v61
    %63 = vmatmul.f32.gmra.mxu0 %v36
    %v64 = vpop.f32.mrf.mxu0
    %v65 = vadd.f32 %v29, %v64
    %66 = vmatmul.f32.gmra.mxu0 %v39
    %v67 = vpop.f32.mrf.mxu0
    %v68 = vadd.f32 %v29, %v67
    %69 = vmatmul.f32.gmra.mxu0 %v42
    %v70 = vpop.f32.mrf.mxu0
    %v71 = vadd.f32 %v29, %v70
    %72 = vdwg.mxu0
    %vm73 = vcmask 261120
    %74 = vst.msk [vmem:[#allocation2] sm:$0xff] %vm73, %v62
    %75 = vst.msk [vmem:[#allocation2 + $0x8] sm:$0xff] %vm73, %v65
    %76 = vst.msk [vmem:[#allocation2 + $0x10] sm:$0xff] %vm73, %v68
    %77 = vst.msk [vmem:[#allocation2 + $0x18] sm:$0xff] %vm73, %v71
    // Predicated region
    $region14: #{tpu_custom_call.1} parent=1 // pred_check
      _
    $region15: #{tpu_custom_call.1} parent=1 // pred_check_branch
      %79 = sbr.rel (0) target = $region17
    $region16: #{tpu_custom_call.1} parent=1 // pred_region
      %81 = vsyncadd [#allocation3], 0
      %s82 = sshll.u32 [#allocation2], 4
      %s83 = int_to_ptr.vmem [resolvable:$true] %s82
      %s84 = sshll.u32 %s3, 4
      %s85 = int_to_ptr.hbm [resolvable:$true] %s84
      %90 = dma.vmem_to_hbm [thread:$0]  %s83, 512, %s85, [#allocation3], 128, 128, 8
    $region17: #{tpu_custom_call.1} parent=1 // pred_fallthru
      _
    // Predicated region
    $region18: #{tpu_custom_call.1} parent=1 // pred_check
      _
    $region19: #{tpu_custom_call.1} parent=1 // pred_check_branch
      %92 = sbr.rel (0) target = $region21
    $region20: #{tpu_custom_call.1} parent=1 // pred_region
      %94 = dma.done [#allocation3], 512
    $region21: #{tpu_custom_call.1} parent=1 // pred_fallthru
      _
    %95 = vsyncpa [#allocation3], 1

</llo_original>
